<compile_context>
chip_gen: v5e
topology: v5e:2x2
jax: 0.10.0
libtpu: 0.0.40
codegen_flags: <defaults>
</compile_context>

<pallas_src>
import math
from collections.abc import Iterable as Iterable_

import jax
import jax.numpy as jnp
from jax.experimental import pallas as pl
from jax.experimental.pallas import tpu as pltpu


# ---------------------------------------------------------------------------
# Fused Pallas kernel: (Linear -> ReLU) x (L-1) -> Linear -> [grouped softmax]
# Everything is transposed: batch lives on the lane axis.
# ---------------------------------------------------------------------------
def make_fused_mlp_kernel(n_layers, n_groups, group_size, apply_softmax):
    """refs layout: x_ref (in_dim, tile_b),
                    [w_i (d_out, d_in), b_i (d_out, 1)] * n_layers,
                    out_ref (out_dim, tile_b)."""

    def kernel(*refs):
        x_ref = refs[0]
        out_ref = refs[-1]
        h = x_ref[...]                                     # (in_dim, tile_b)
        for i in range(n_layers):
            w = refs[1 + 2 * i][...]                       # (d_out, d_in), torch layout
            b = refs[2 + 2 * i][...]                       # (d_out, 1)
            h = jnp.dot(w, h.astype(w.dtype),
                        preferred_element_type=jnp.float32) + b
            if i < n_layers - 1:                           # ReLU on all but fc_q
                h = jnp.maximum(h, 0.0)

        if apply_softmax:
            # C51 softmax over each action's `group_size` atoms: contiguous row
            # blocks of the (out_dim, tile_b) logits.  Static sublane slices,
            # per-group axis-0 reductions, exact divide, direct per-group store.
            for g in range(n_groups):
                lo = g * group_size
                hi = lo + group_size
                hg = h[lo:hi, :]
                m = jnp.max(hg, axis=0, keepdims=True)
                e = jnp.exp(hg - m)                        # EUP
                s = jnp.sum(e, axis=0, keepdims=True)
                out_ref[lo:hi, :] = (e / s).astype(out_ref.dtype)
        else:
            out_ref[...] = h.astype(out_ref.dtype)

    return kernel


# ---------------------------------------------------------------------------
# Parameter construction (deterministic, synthetic — mirrors module __init__)
# Weights kept in the torch nn.Linear (out, in) layout; biases zero.
# ---------------------------------------------------------------------------
def init_mlp_policy_params(key, input_size, state_len, hidden_sizes, n_actions, n_out):
    if n_out == -1:
        out_dim = n_actions
    else:
        out_dim = n_actions * (n_out if isinstance(n_out, int) else math.prod(n_out))

    dims = [input_size * state_len] + list(hidden_sizes) + [out_dim]
    params = []
    for din, dout in zip(dims[:-1], dims[1:]):
        key, sub = jax.random.split(key)
        # kaiming-normal-like fan_in scaling (as _init_weight), torch (out, in) layout.
        w = jax.random.normal(sub, (dout, din), dtype=jnp.float32) * math.sqrt(2.0 / din)
        b = jnp.zeros((dout,), dtype=jnp.float32)
        params.append((w, b))
    return params


# ---------------------------------------------------------------------------
# Forward wrapper (glue in plain JAX, hot path in one fused Pallas call)
# ---------------------------------------------------------------------------
def mlp_policy_forward(x, params, *, algo, n_actions, n_out, state_len,
                       use_bf16_matmul=False, batch_tile=2048):
    if state_len != 1:
        # x.flatten(-2): merge the last two dims
        x = x.reshape(*x.shape[:-2], x.shape[-2] * x.shape[-1])
    if x.ndim == 1:
        x = x[None, :]
    x = x.astype(jnp.float32)

    batch, in_dim = x.shape
    n_layers = len(params)
    out_dim = params[-1][0].shape[0]

    apply_softmax = algo == "C51"
    # Softmax group = size of the last dim of the reshaped output.
    if isinstance(n_out, int):
        group_size = out_dim if n_out == -1 else n_out
    else:
        group_size = int(tuple(n_out)[-1])
    n_groups = out_dim // group_size

    # Batch tiling (batch is the LANE axis in the kernel):
    #   * small batches: one full-extent tile (block == full array dims).
    #   * large batches: 128-aligned tiles, capped at batch_tile, and also
    #     capped near batch/2 so the grid keeps >= 2 steps (v7x megacore).
    if batch <= 256:
        tile_b = batch
    else:
        half = -(-batch // 2)                      # ceil(batch / 2)
        half = ((half + 127) // 128) * 128         # round up to lane multiple
        tile_b = max(128, min(batch_tile, half))
    grid = (pl.cdiv(batch, tile_b),)

    # Layout plumbing only: put batch on the lane axis.
    xt = x.T                                        # (in_dim, batch)

    w_dtype = jnp.bfloat16 if use_bf16_matmul else jnp.float32
    flat_args = [xt]
    in_specs = [pl.BlockSpec((in_dim, tile_b), lambda i: (0, i))]
    for w, b in params:
        flat_args.append(w.astype(w_dtype))                       # pre-cast once (wrapper)
        flat_args.append(b.reshape(-1, 1).astype(jnp.float32))    # (d_out, 1)
        in_specs.append(pl.BlockSpec(w.shape, lambda i: (0, 0)))          # weights resident
        in_specs.append(pl.BlockSpec((w.shape[0], 1), lambda i: (0, 0)))  # bias resident
    out_spec = pl.BlockSpec((out_dim, tile_b), lambda i: (0, i))

    # Advisory cost estimate so XLA schedules around the custom call.
    flops = sum(2 * batch * w.shape[0] * w.shape[1] + batch * w.shape[0]
                for w, _ in params)
    transcendentals = batch * out_dim if apply_softmax else 0
    bytes_accessed = 4 * (x.size + batch * out_dim
                          + sum(w.size + b.size for w, b in params))

    logits_t = pl.pallas_call(
        make_fused_mlp_kernel(n_layers, n_groups, group_size, apply_softmax),
        out_shape=jax.ShapeDtypeStruct((out_dim, batch), jnp.float32),
        grid=grid,
        in_specs=in_specs,
        out_specs=out_spec,
        compiler_params=pltpu.CompilerParams(
            dimension_semantics=("parallel",)),
        cost_estimate=pl.CostEstimate(
            flops=flops,
            transcendentals=transcendentals,
            bytes_accessed=bytes_accessed),
    )(*flat_args)

    logits = logits_t.T                              # back to (batch, out_dim)

    if isinstance(n_out, int) and n_out != -1:
        out = logits.reshape(-1, n_actions, n_out)
    elif isinstance(n_out, Iterable_):
        out = logits.reshape(-1, n_actions, *tuple(n_out))
    else:
        out = logits

    return jnp.squeeze(out)


# ---------------------------------------------------------------------------
# Pure-JAX reference (for correctness sanity check)
# ---------------------------------------------------------------------------
def reference_forward(x, params, *, algo, n_actions, n_out, state_len):
    if state_len != 1:
        x = x.reshape(*x.shape[:-2], x.shape[-2] * x.shape[-1])
    if x.ndim == 1:
        x = x[None, :]
    h = x
    for i, (w, b) in enumerate(params):
        h = h @ w.T + b
        if i < len(params) - 1:
            h = jnp.maximum(h, 0.0)
    out = h
    if isinstance(n_out, int) and n_out != -1:
        out = out.reshape(-1, n_actions, n_out)
    elif isinstance(n_out, Iterable_):
        out = out.reshape(-1, n_actions, *tuple(n_out))
    if algo == "C51":
        out = jax.nn.softmax(out, axis=-1)
    return jnp.squeeze(out)


if __name__ == "__main__":
    # Small config consistent with MlpPolicy(__init__)
    algo = "C51"
    batch = 8
    input_size = 16
    state_len = 1
    hidden_sizes = [64, 32]
    n_actions = 4
    n_out = 8

    key = jax.random.PRNGKey(0)
    key, xkey = jax.random.split(key)
    x = jax.random.normal(xkey, (batch, input_size * state_len), dtype=jnp.float32)

    params = init_mlp_policy_params(
        key, input_size, state_len, hidden_sizes, n_actions, n_out
    )

    out = mlp_policy_forward(
        x, params, algo=algo, n_actions=n_actions, n_out=n_out, state_len=state_len
    )
    out = jax.block_until_ready(out)

    ref = reference_forward(
        x, params, algo=algo, n_actions=n_actions, n_out=n_out, state_len=state_len
    )
    assert out.shape == (batch, n_actions, n_out), out.shape
    assert jnp.allclose(out, ref, atol=1e-4, rtol=1e-4), "mismatch vs reference"
    assert jnp.allclose(jnp.sum(out, axis=-1), 1.0, atol=1e-5), "softmax rows != 1"

    # TODO(synk): PolicyNetwork.save/load (torch.save of state_dict) has no kernel
    # equivalent; parameters are plain JAX arrays here.
    print("KERNEL_OK")
</pallas_src>

<mosaic_0001>
module attributes {stable_mosaic.version = 11 : i64} {
  func.func @kernel(%arg0: i32, %arg1: memref<16x8xf32, #tpu.memory_space<vmem>>, %arg2: memref<64x16xf32, #tpu.memory_space<vmem>>, %arg3: memref<64x1xf32, #tpu.memory_space<vmem>>, %arg4: memref<32x64xf32, #tpu.memory_space<vmem>>, %arg5: memref<32x1xf32, #tpu.memory_space<vmem>>, %arg6: memref<32x32xf32, #tpu.memory_space<vmem>>, %arg7: memref<32x1xf32, #tpu.memory_space<vmem>>, %arg8: memref<32x8xf32, #tpu.memory_space<vmem>>) attributes {dimension_semantics = [#tpu.dimension_semantics<parallel>], iteration_bounds = array<i64: 1>, scalar_prefetch = 0 : i64, scratch_operands = 0 : i64, tpu.core_type = #tpu.core_type<tc>, window_params = [{transform_indices = @transform_0, window_bounds = array<i64: 16, 8>}, {pipeline_mode = #tpu.pipeline_mode<synchronous>, transform_indices = @transform_1, window_bounds = array<i64: 64, 16>}, {pipeline_mode = #tpu.pipeline_mode<synchronous>, transform_indices = @transform_2, window_bounds = array<i64: 64, 1>}, {pipeline_mode = #tpu.pipeline_mode<synchronous>, transform_indices = @transform_3, window_bounds = array<i64: 32, 64>}, {pipeline_mode = #tpu.pipeline_mode<synchronous>, transform_indices = @transform_4, window_bounds = array<i64: 32, 1>}, {pipeline_mode = #tpu.pipeline_mode<synchronous>, transform_indices = @transform_5, window_bounds = array<i64: 32, 32>}, {pipeline_mode = #tpu.pipeline_mode<synchronous>, transform_indices = @transform_6, window_bounds = array<i64: 32, 1>}, {transform_indices = @transform_7, window_bounds = array<i64: 32, 8>}]} {
    %c0 = arith.constant 0 : index
    %c0_0 = arith.constant 0 : index
    %0 = vector.load %arg1[%c0, %c0_0] : memref<16x8xf32, #tpu.memory_space<vmem>>, vector<16x8xf32>
    %c0_1 = arith.constant 0 : index
    %c0_2 = arith.constant 0 : index
    %1 = vector.load %arg2[%c0_1, %c0_2] : memref<64x16xf32, #tpu.memory_space<vmem>>, vector<64x16xf32>
    %c0_3 = arith.constant 0 : index
    %c0_4 = arith.constant 0 : index
    %2 = vector.load %arg3[%c0_3, %c0_4] : memref<64x1xf32, #tpu.memory_space<vmem>>, vector<64x1xf32>
    %cst = arith.constant dense<0.000000e+00> : vector<64x8xf32>
    %3 = tpu.matmul %1, %0, %cst {dimension_numbers = #tpu.dot_dimension_numbers<[1], [0], [0], [1], [0, 0, 1, 1], [], []>} : vector<64x16xf32>, vector<16x8xf32>, vector<64x8xf32> -> vector<64x8xf32>
    %4 = vector.broadcast %2 : vector<64x1xf32> to vector<64x8xf32>
    %5 = arith.addf %3, %4 : vector<64x8xf32>
    %cst_5 = arith.constant 0.000000e+00 : f32
    %6 = vector.broadcast %cst_5 : f32 to vector<64x8xf32>
    %7 = arith.maximumf %5, %6 : vector<64x8xf32>
    %c0_6 = arith.constant 0 : index
    %c0_7 = arith.constant 0 : index
    %8 = vector.load %arg4[%c0_6, %c0_7] : memref<32x64xf32, #tpu.memory_space<vmem>>, vector<32x64xf32>
    %c0_8 = arith.constant 0 : index
    %c0_9 = arith.constant 0 : index
    %9 = vector.load %arg5[%c0_8, %c0_9] : memref<32x1xf32, #tpu.memory_space<vmem>>, vector<32x1xf32>
    %cst_10 = arith.constant dense<0.000000e+00> : vector<32x8xf32>
    %10 = tpu.matmul %8, %7, %cst_10 {dimension_numbers = #tpu.dot_dimension_numbers<[1], [0], [0], [1], [0, 0, 1, 1], [], []>} : vector<32x64xf32>, vector<64x8xf32>, vector<32x8xf32> -> vector<32x8xf32>
    %11 = vector.broadcast %9 : vector<32x1xf32> to vector<32x8xf32>
    %12 = arith.addf %10, %11 : vector<32x8xf32>
    %cst_11 = arith.constant 0.000000e+00 : f32
    %13 = vector.broadcast %cst_11 : f32 to vector<32x8xf32>
    %14 = arith.maximumf %12, %13 : vector<32x8xf32>
    %c0_12 = arith.constant 0 : index
    %c0_13 = arith.constant 0 : index
    %15 = vector.load %arg6[%c0_12, %c0_13] : memref<32x32xf32, #tpu.memory_space<vmem>>, vector<32x32xf32>
    %c0_14 = arith.constant 0 : index
    %c0_15 = arith.constant 0 : index
    %16 = vector.load %arg7[%c0_14, %c0_15] : memref<32x1xf32, #tpu.memory_space<vmem>>, vector<32x1xf32>
    %cst_16 = arith.constant dense<0.000000e+00> : vector<32x8xf32>
    %17 = tpu.matmul %15, %14, %cst_16 {dimension_numbers = #tpu.dot_dimension_numbers<[1], [0], [0], [1], [0, 0, 1, 1], [], []>} : vector<32x32xf32>, vector<32x8xf32>, vector<32x8xf32> -> vector<32x8xf32>
    %18 = vector.broadcast %16 : vector<32x1xf32> to vector<32x8xf32>
    %19 = arith.addf %17, %18 : vector<32x8xf32>
    %20 = vector.extract_strided_slice %19 {offsets = [0, 0], sizes = [8, 8], strides = [1, 1]} : vector<32x8xf32> to vector<8x8xf32>
    %cst_17 = arith.constant dense<0xFF800000> : vector<8xf32>
    %21 = vector.multi_reduction <maximumf>, %20, %cst_17 [0] : vector<8x8xf32> to vector<8xf32>
    %22 = vector.shape_cast %21 : vector<8xf32> to vector<1x8xf32>
    %23 = vector.broadcast %22 : vector<1x8xf32> to vector<8x8xf32>
    %24 = arith.subf %20, %23 : vector<8x8xf32>
    %25 = math.exp %24 : vector<8x8xf32>
    %cst_18 = arith.constant dense<0.000000e+00> : vector<8xf32>
    %26 = vector.multi_reduction <add>, %25, %cst_18 [0] : vector<8x8xf32> to vector<8xf32>
    %27 = vector.shape_cast %26 : vector<8xf32> to vector<1x8xf32>
    %28 = vector.broadcast %27 : vector<1x8xf32> to vector<8x8xf32>
    %29 = arith.divf %25, %28 : vector<8x8xf32>
    %c0_19 = arith.constant 0 : index
    %c0_20 = arith.constant 0 : index
    %30 = vector.load %arg8[%c0_19, %c0_20] : memref<32x8xf32, #tpu.memory_space<vmem>>, vector<8x8xf32>
    tpu.vector_store %arg8[%c0_19, %c0_20], %29 {strides = array<i32>} : memref<32x8xf32, #tpu.memory_space<vmem>>, vector<8x8xf32>,
    %31 = vector.extract_strided_slice %19 {offsets = [8, 0], sizes = [8, 8], strides = [1, 1]} : vector<32x8xf32> to vector<8x8xf32>
    %cst_21 = arith.constant dense<0xFF800000> : vector<8xf32>
    %32 = vector.multi_reduction <maximumf>, %31, %cst_21 [0] : vector<8x8xf32> to vector<8xf32>
    %33 = vector.shape_cast %32 : vector<8xf32> to vector<1x8xf32>
    %34 = vector.broadcast %33 : vector<1x8xf32> to vector<8x8xf32>
    %35 = arith.subf %31, %34 : vector<8x8xf32>
    %36 = math.exp %35 : vector<8x8xf32>
    %cst_22 = arith.constant dense<0.000000e+00> : vector<8xf32>
    %37 = vector.multi_reduction <add>, %36, %cst_22 [0] : vector<8x8xf32> to vector<8xf32>
    %38 = vector.shape_cast %37 : vector<8xf32> to vector<1x8xf32>
    %39 = vector.broadcast %38 : vector<1x8xf32> to vector<8x8xf32>
    %40 = arith.divf %36, %39 : vector<8x8xf32>
    %c8 = arith.constant 8 : index
    %c0_23 = arith.constant 0 : index
    %41 = vector.load %arg8[%c8, %c0_23] : memref<32x8xf32, #tpu.memory_space<vmem>>, vector<8x8xf32>
    tpu.vector_store %arg8[%c8, %c0_23], %40 {strides = array<i32>} : memref<32x8xf32, #tpu.memory_space<vmem>>, vector<8x8xf32>,
    %42 = vector.extract_strided_slice %19 {offsets = [16, 0], sizes = [8, 8], strides = [1, 1]} : vector<32x8xf32> to vector<8x8xf32>
    %cst_24 = arith.constant dense<0xFF800000> : vector<8xf32>
    %43 = vector.multi_reduction <maximumf>, %42, %cst_24 [0] : vector<8x8xf32> to vector<8xf32>
    %44 = vector.shape_cast %43 : vector<8xf32> to vector<1x8xf32>
    %45 = vector.broadcast %44 : vector<1x8xf32> to vector<8x8xf32>
    %46 = arith.subf %42, %45 : vector<8x8xf32>
    %47 = math.exp %46 : vector<8x8xf32>
    %cst_25 = arith.constant dense<0.000000e+00> : vector<8xf32>
    %48 = vector.multi_reduction <add>, %47, %cst_25 [0] : vector<8x8xf32> to vector<8xf32>
    %49 = vector.shape_cast %48 : vector<8xf32> to vector<1x8xf32>
    %50 = vector.broadcast %49 : vector<1x8xf32> to vector<8x8xf32>
    %51 = arith.divf %47, %50 : vector<8x8xf32>
    %c16 = arith.constant 16 : index
    %c0_26 = arith.constant 0 : index
    %52 = vector.load %arg8[%c16, %c0_26] : memref<32x8xf32, #tpu.memory_space<vmem>>, vector<8x8xf32>
    tpu.vector_store %arg8[%c16, %c0_26], %51 {strides = array<i32>} : memref<32x8xf32, #tpu.memory_space<vmem>>, vector<8x8xf32>,
    %53 = vector.extract_strided_slice %19 {offsets = [24, 0], sizes = [8, 8], strides = [1, 1]} : vector<32x8xf32> to vector<8x8xf32>
    %cst_27 = arith.constant dense<0xFF800000> : vector<8xf32>
    %54 = vector.multi_reduction <maximumf>, %53, %cst_27 [0] : vector<8x8xf32> to vector<8xf32>
    %55 = vector.shape_cast %54 : vector<8xf32> to vector<1x8xf32>
    %56 = vector.broadcast %55 : vector<1x8xf32> to vector<8x8xf32>
    %57 = arith.subf %53, %56 : vector<8x8xf32>
    %58 = math.exp %57 : vector<8x8xf32>
    %cst_28 = arith.constant dense<0.000000e+00> : vector<8xf32>
    %59 = vector.multi_reduction <add>, %58, %cst_28 [0] : vector<8x8xf32> to vector<8xf32>
    %60 = vector.shape_cast %59 : vector<8xf32> to vector<1x8xf32>
    %61 = vector.broadcast %60 : vector<1x8xf32> to vector<8x8xf32>
    %62 = arith.divf %58, %61 : vector<8x8xf32>
    %c24 = arith.constant 24 : index
    %c0_29 = arith.constant 0 : index
    %63 = vector.load %arg8[%c24, %c0_29] : memref<32x8xf32, #tpu.memory_space<vmem>>, vector<8x8xf32>
    tpu.vector_store %arg8[%c24, %c0_29], %62 {strides = array<i32>} : memref<32x8xf32, #tpu.memory_space<vmem>>, vector<8x8xf32>,
    return
  }
  func.func @transform_0(%arg0: i32) -> (i32, i32) {
    %c0_i32 = arith.constant 0 : i32
    %c0_i32_0 = arith.constant 0 : i32
    return %c0_i32, %arg0 : i32, i32
  }
  func.func @transform_1(%arg0: i32) -> (i32, i32) {
    %c0_i32 = arith.constant 0 : i32
    %c0_i32_0 = arith.constant 0 : i32
    %c0_i32_1 = arith.constant 0 : i32
    return %c0_i32, %c0_i32_0 : i32, i32
  }
  func.func @transform_2(%arg0: i32) -> (i32, i32) {
    %c0_i32 = arith.constant 0 : i32
    %c0_i32_0 = arith.constant 0 : i32
    %c0_i32_1 = arith.constant 0 : i32
    return %c0_i32, %c0_i32_0 : i32, i32
  }
  func.func @transform_3(%arg0: i32) -> (i32, i32) {
    %c0_i32 = arith.constant 0 : i32
    %c0_i32_0 = arith.constant 0 : i32
    %c0_i32_1 = arith.constant 0 : i32
    return %c0_i32, %c0_i32_0 : i32, i32
  }
  func.func @transform_4(%arg0: i32) -> (i32, i32) {
    %c0_i32 = arith.constant 0 : i32
    %c0_i32_0 = arith.constant 0 : i32
    %c0_i32_1 = arith.constant 0 : i32
    return %c0_i32, %c0_i32_0 : i32, i32
  }
  func.func @transform_5(%arg0: i32) -> (i32, i32) {
    %c0_i32 = arith.constant 0 : i32
    %c0_i32_0 = arith.constant 0 : i32
    %c0_i32_1 = arith.constant 0 : i32
    return %c0_i32, %c0_i32_0 : i32, i32
  }
  func.func @transform_6(%arg0: i32) -> (i32, i32) {
    %c0_i32 = arith.constant 0 : i32
    %c0_i32_0 = arith.constant 0 : i32
    %c0_i32_1 = arith.constant 0 : i32
    return %c0_i32, %c0_i32_0 : i32, i32
  }
  func.func @transform_7(%arg0: i32) -> (i32, i32) {
    %c0_i32 = arith.constant 0 : i32
    %c0_i32_0 = arith.constant 0 : i32
    return %c0_i32, %arg0 : i32, i32
  }
}

</mosaic_0001>

<llo_original>
// kernel: tpu_custom_call.1
$region0: #{tpu_custom_call.1}
  #allocation0 [shape = 'u32[]', space=smem, size = 0x4, offset = 0x4, fixed_abs, tag = 'smem constant byte address 0x4 - core index']
  #allocation1 [shape = 'u32[72,128]{1,0:T(1,128)}', space=vmem, size = 0x9000, scoped, tag = 'internal scratch']
  %s0 = inlined_call_operand.vmem [shape: f32[16,8], index: 0, kind: input, shape index: {}]
  %s1 = inlined_call_operand.vmem [shape: f32[64,16], index: 1, kind: input, shape index: {}]
  %s2 = inlined_call_operand.vmem [shape: f32[64,1], index: 2, kind: input, shape index: {}]
  %s3 = inlined_call_operand.vmem [shape: f32[32,64], index: 3, kind: input, shape index: {}]
  %s4 = inlined_call_operand.vmem [shape: f32[32,1], index: 4, kind: input, shape index: {}]
  %s5 = inlined_call_operand.vmem [shape: f32[32,32], index: 5, kind: input, shape index: {}]
  %s6 = inlined_call_operand.vmem [shape: f32[32,1], index: 6, kind: input, shape index: {}]
  %s7 = inlined_call_operand.vmem [shape: f32[32,8], index: 7, kind: output, shape index: {}]
  %s8 = sld [smem:[#allocation0]]
  $region38: #{tpu_custom_call.1} parent=0
    _
  %s10 = ssub.s32 1, %s8
  %s11 = scalar_select 0, %s10, %s8
  // Predicated region
  $region2: #{tpu_custom_call.1} parent=0 // pred_check
    _
  $region3: #{tpu_custom_call.1} parent=0 // pred_check_branch
    %13 = sbr.rel (0) target = $region5
  $region4: #{tpu_custom_call.1} parent=0 // pred_region
    _
  $region5: #{tpu_custom_call.1} parent=0 // pred_fallthru
    _
  // Predicated region
  $region6: #{tpu_custom_call.1} parent=0 // pred_check
    _
  $region7: #{tpu_custom_call.1} parent=0 // pred_check_branch
    %15 = sbr.rel (0) target = $region9
  $region8: #{tpu_custom_call.1} parent=0 // pred_region
    _
  $region9: #{tpu_custom_call.1} parent=0 // pred_fallthru
    _
  // Predicated region
  $region10: #{tpu_custom_call.1} parent=0 // pred_check
    _
  $region11: #{tpu_custom_call.1} parent=0 // pred_check_branch
    %17 = sbr.rel (0) target = $region13
  $region12: #{tpu_custom_call.1} parent=0 // pred_region
    _
  $region13: #{tpu_custom_call.1} parent=0 // pred_fallthru
    _
  // Predicated region
  $region14: #{tpu_custom_call.1} parent=0 // pred_check
    _
  $region15: #{tpu_custom_call.1} parent=0 // pred_check_branch
    %19 = sbr.rel (0) target = $region17
  $region16: #{tpu_custom_call.1} parent=0 // pred_region
    _
  $region17: #{tpu_custom_call.1} parent=0 // pred_fallthru
    _
  // Predicated region
  $region18: #{tpu_custom_call.1} parent=0 // pred_check
    _
  $region19: #{tpu_custom_call.1} parent=0 // pred_check_branch
    %21 = sbr.rel (0) target = $region21
  $region20: #{tpu_custom_call.1} parent=0 // pred_region
    _
  $region21: #{tpu_custom_call.1} parent=0 // pred_fallthru
    _
  // Predicated region
  $region22: #{tpu_custom_call.1} parent=0 // pred_check
    _
  $region23: #{tpu_custom_call.1} parent=0 // pred_check_branch
    %23 = sbr.rel (0) target = $region25
  $region24: #{tpu_custom_call.1} parent=0 // pred_region
    _
  $region25: #{tpu_custom_call.1} parent=0 // pred_fallthru
    _
  // Predicated region
  $region26: #{tpu_custom_call.1} parent=0 // pred_check
    _
  $region27: #{tpu_custom_call.1} parent=0 // pred_check_branch
    %25 = sbr.rel (0) target = $region29
  $region28: #{tpu_custom_call.1} parent=0 // pred_region
    _
  $region29: #{tpu_custom_call.1} parent=0 // pred_fallthru
    _
  %v26 = vld [vmem:[%s0] sm:$0xff]
  %v27 = vld [vmem:[%s0 + $0x8] sm:$0xff]
  %v28 = vld [vmem:[%s1] sm:$0xff]
  %v29 = vld [vmem:[%s1 + $0x8] sm:$0xff]
  %v30 = vld [vmem:[%s1 + $0x10] sm:$0xff]
  %v31 = vld [vmem:[%s1 + $0x18] sm:$0xff]
  %v32 = vld [vmem:[%s1 + $0x20] sm:$0xff]
  %v33 = vld [vmem:[%s1 + $0x28] sm:$0xff]
  %v34 = vld [vmem:[%s1 + $0x30] sm:$0xff]
  %v35 = vld [vmem:[%s1 + $0x38] sm:$0xff]
  %v36 = vld [vmem:[%s2] sm:$0xff]
  %v37 = vld [vmem:[%s2 + $0x8] sm:$0xff]
  %v38 = vld [vmem:[%s2 + $0x10] sm:$0xff]
  %v39 = vld [vmem:[%s2 + $0x18] sm:$0xff]
  %v40 = vld [vmem:[%s2 + $0x20] sm:$0xff]
  %v41 = vld [vmem:[%s2 + $0x28] sm:$0xff]
  %v42 = vld [vmem:[%s2 + $0x30] sm:$0xff]
  %v43 = vld [vmem:[%s2 + $0x38] sm:$0xff]
  %45 = vset.pattern.permute.xlu0 0
  %46 = vperm.xlu0 %45, %v36
  %v47 = vpop.permute.xlu0 %46
  %50 = vset.pattern.permute.xlu0 0
  %51 = vperm.xlu0 %50, %v37
  %v52 = vpop.permute.xlu0 %51
  %55 = vset.pattern.permute.xlu0 0
  %56 = vperm.xlu0 %55, %v38
  %v57 = vpop.permute.xlu0 %56
  %60 = vset.pattern.permute.xlu0 0
  %61 = vperm.xlu0 %60, %v39
  %v62 = vpop.permute.xlu0 %61
  %65 = vset.pattern.permute.xlu0 0
  %66 = vperm.xlu0 %65, %v40
  %v67 = vpop.permute.xlu0 %66
  %70 = vset.pattern.permute.xlu0 0
  %71 = vperm.xlu0 %70, %v41
  %v72 = vpop.permute.xlu0 %71
  %75 = vset.pattern.permute.xlu0 0
  %76 = vperm.xlu0 %75, %v42
  %v77 = vpop.permute.xlu0 %76
  %80 = vset.pattern.permute.xlu0 0
  %81 = vperm.xlu0 %80, %v43
  %v82 = vpop.permute.xlu0 %81
  %vm84 = vcmask 130048
  %v86 = vsel %vm84, %v28, 0
  %v89 = vsel %vm84, %v29, 0
  %v92 = vsel %vm84, %v30, 0
  %v95 = vsel %vm84, %v31, 0
  %v98 = vsel %vm84, %v32, 0
  %v101 = vsel %vm84, %v33, 0
  %v104 = vsel %vm84, %v34, 0
  %v107 = vsel %vm84, %v35, 0
  %109 = vmatpush.msra.mxu0 0.0
  %110 = vmatpush.msra.mxu0 0.0
  %111 = vmatpush.msra.mxu0 0.0
  %112 = vmatpush.msra.mxu0 0.0
  %113 = vmatpush.msra.mxu0 0.0
  %114 = vmatpush.msra.mxu0 0.0
  %115 = vmatpush.msra.mxu0 0.0
  %116 = vmatpush.msra.mxu0 0.0
  %117 = vmatpush.msra.mxu0 0.0
  %118 = vmatpush.msra.mxu0 0.0
  %119 = vmatpush.msra.mxu0 0.0
  %120 = vmatpush.msra.mxu0 0.0
  %121 = vmatpush.msra.mxu0 0.0
  %122 = vmatpush.msra.mxu0 0.0
  %123 = vmatpush.msra.mxu0 %v27
  %124 = vmatpush.msra.mxu0 %v26
  %125 = vmatmul.f32.gmra.mxu0 %v86
  %v126 = vpop.f32.mrf.mxu0
  %v127 = vadd.f32 %v47, %v126
  %128 = vmatmul.f32.gmra.mxu0 %v89
  %v129 = vpop.f32.mrf.mxu0
  %v130 = vadd.f32 %v52, %v129
  %131 = vmatmul.f32.gmra.mxu0 %v92
  %v132 = vpop.f32.mrf.mxu0
  %v133 = vadd.f32 %v57, %v132
  %134 = vmatmul.f32.gmra.mxu0 %v95
  %v135 = vpop.f32.mrf.mxu0
  %v136 = vadd.f32 %v62, %v135
  %137 = vmatmul.f32.gmra.mxu0 %v98
  %v138 = vpop.f32.mrf.mxu0
  %v139 = vadd.f32 %v67, %v138
  %140 = vmatmul.f32.gmra.mxu0 %v101
  %v141 = vpop.f32.mrf.mxu0
  %v142 = vadd.f32 %v72, %v141
  %143 = vmatmul.f32.gmra.mxu0 %v104
  %v144 = vpop.f32.mrf.mxu0
  %v145 = vadd.f32 %v77, %v144
  %146 = vmatmul.f32.gmra.mxu0 %v107
  %v147 = vpop.f32.mrf.mxu0
  %v148 = vadd.f32 %v82, %v147
  %149 = vdwg.mxu0
  %v150 = vmax.f32 %v127, 0.0
  %v151 = vmax.f32 %v130, 0.0
  %v152 = vmax.f32 %v133, 0.0
  %v153 = vmax.f32 %v136, 0.0
  %v154 = vmax.f32 %v139, 0.0
  %v155 = vmax.f32 %v142, 0.0
  %v156 = vmax.f32 %v145, 0.0
  %v157 = vmax.f32 %v148, 0.0
  %v158 = vld [vmem:[%s3] sm:$0xff]
  %v159 = vld [vmem:[%s3 + $0x8] sm:$0xff]
  %v160 = vld [vmem:[%s3 + $0x10] sm:$0xff]
  %v161 = vld [vmem:[%s3 + $0x18] sm:$0xff]
  %v162 = vld [vmem:[%s4] sm:$0xff]
  %v163 = vld [vmem:[%s4 + $0x8] sm:$0xff]
  %v164 = vld [vmem:[%s4 + $0x10] sm:$0xff]
  %v165 = vld [vmem:[%s4 + $0x18] sm:$0xff]
  %167 = vset.pattern.permute.xlu0 0
  %168 = vperm.xlu0 %167, %v162
  %v169 = vpop.permute.xlu0 %168
  %172 = vset.pattern.permute.xlu0 0
  %173 = vperm.xlu0 %172, %v163
  %v174 = vpop.permute.xlu0 %173
  %177 = vset.pattern.permute.xlu0 0
  %178 = vperm.xlu0 %177, %v164
  %v179 = vpop.permute.xlu0 %178
  %182 = vset.pattern.permute.xlu0 0
  %183 = vperm.xlu0 %182, %v165
  %v184 = vpop.permute.xlu0 %183
  %vm186 = vcmask 523264
  %v188 = vsel %vm186, %v158, 0
  %v191 = vsel %vm186, %v159, 0
  %v194 = vsel %vm186, %v160, 0
  %v197 = vsel %vm186, %v161, 0
  %199 = vmatpush.msra.mxu0 0.0
  %200 = vmatpush.msra.mxu0 0.0
  %201 = vmatpush.msra.mxu0 0.0
  %202 = vmatpush.msra.mxu0 0.0
  %203 = vmatpush.msra.mxu0 0.0
  %204 = vmatpush.msra.mxu0 0.0
  %205 = vmatpush.msra.mxu0 0.0
  %206 = vmatpush.msra.mxu0 0.0
  %207 = vmatpush.msra.mxu0 %v157
  %208 = vmatpush.msra.mxu0 %v156
  %209 = vmatpush.msra.mxu0 %v155
  %210 = vmatpush.msra.mxu0 %v154
  %211 = vmatpush.msra.mxu0 %v153
  %212 = vmatpush.msra.mxu0 %v152
  %213 = vmatpush.msra.mxu0 %v151
  %214 = vmatpush.msra.mxu0 %v150
  %215 = vmatmul.f32.gmra.mxu0 %v188
  %v216 = vpop.f32.mrf.mxu0
  %v217 = vadd.f32 %v169, %v216
  %218 = vmatmul.f32.gmra.mxu0 %v191
  %v219 = vpop.f32.mrf.mxu0
  %v220 = vadd.f32 %v174, %v219
  %221 = vmatmul.f32.gmra.mxu0 %v194
  %v222 = vpop.f32.mrf.mxu0
  %v223 = vadd.f32 %v179, %v222
  %224 = vmatmul.f32.gmra.mxu0 %v197
  %v225 = vpop.f32.mrf.mxu0
  %v226 = vadd.f32 %v184, %v225
  %227 = vdwg.mxu0
  %v228 = vmax.f32 %v217, 0.0
  %v229 = vmax.f32 %v220, 0.0
  %v230 = vmax.f32 %v223, 0.0
  %v231 = vmax.f32 %v226, 0.0
  %v232 = vld [vmem:[%s5] sm:$0xff]
  %v233 = vld [vmem:[%s5 + $0x8] sm:$0xff]
  %v234 = vld [vmem:[%s5 + $0x10] sm:$0xff]
  %v235 = vld [vmem:[%s5 + $0x18] sm:$0xff]
  %v236 = vld [vmem:[%s6] sm:$0xff]
  %v237 = vld [vmem:[%s6 + $0x8] sm:$0xff]
  %v238 = vld [vmem:[%s6 + $0x10] sm:$0xff]
  %v239 = vld [vmem:[%s6 + $0x18] sm:$0xff]
  %241 = vset.pattern.permute.xlu0 0
  %242 = vperm.xlu0 %241, %v236
  %v243 = vpop.permute.xlu0 %242
  %246 = vset.pattern.permute.xlu0 0
  %247 = vperm.xlu0 %246, %v237
  %v248 = vpop.permute.xlu0 %247
  %251 = vset.pattern.permute.xlu0 0
  %252 = vperm.xlu0 %251, %v238
  %v253 = vpop.permute.xlu0 %252
  %256 = vset.pattern.permute.xlu0 0
  %257 = vperm.xlu0 %256, %v239
  %v258 = vpop.permute.xlu0 %257
  %vm260 = vcmask 261120
  %v262 = vsel %vm260, %v232, 0
  %v265 = vsel %vm260, %v233, 0
  %v268 = vsel %vm260, %v234, 0
  %v271 = vsel %vm260, %v235, 0
  %273 = vmatpush.msra.mxu0 0.0
  %274 = vmatpush.msra.mxu0 0.0
  %275 = vmatpush.msra.mxu0 0.0
  %276 = vmatpush.msra.mxu0 0.0
  %277 = vmatpush.msra.mxu0 0.0
  %278 = vmatpush.msra.mxu0 0.0
  %279 = vmatpush.msra.mxu0 0.0
  %280 = vmatpush.msra.mxu0 0.0
  %281 = vmatpush.msra.mxu0 0.0
  %282 = vmatpush.msra.mxu0 0.0
  %283 = vmatpush.msra.mxu0 0.0
  %284 = vmatpush.msra.mxu0 0.0
  %285 = vmatpush.msra.mxu0 %v231
  %286 = vmatpush.msra.mxu0 %v230
  %287 = vmatpush.msra.mxu0 %v229
  %288 = vmatpush.msra.mxu0 %v228
  %289 = vmatmul.f32.gmra.mxu0 %v262
  %v290 = vpop.f32.mrf.mxu0
  %v291 = vadd.f32 %v243, %v290
  %292 = vmatmul.f32.gmra.mxu0 %v265
  %v293 = vpop.f32.mrf.mxu0
  %v294 = vadd.f32 %v248, %v293
  %295 = vmatmul.f32.gmra.mxu0 %v268
  %v296 = vpop.f32.mrf.mxu0
  %v297 = vadd.f32 %v253, %v296
  %298 = vmatmul.f32.gmra.mxu0 %v271
  %v299 = vpop.f32.mrf.mxu0
  %v300 = vadd.f32 %v258, %v299
  %301 = vdwg.mxu0
  %vm302 = vcmask 64512
  %v303 = vsel %vm302, %v291, -inf
  %v304 = vrot.slane %v303, 4
  %v305 = vmax.f32 %v303, %v304
  %v306 = vrot.slane %v305, 2
  %v307 = vmax.f32 %v305, %v306
  %v308 = vrot.slane %v307, 1
  %v309 = vmax.f32 %v307, %v308
  %v310 = vsub.f32 %v291, %v309
  %v311 = vmul.f32 %v310, 1.442695
  %v312 = vpow.pop %v311
  %v313 = vsel %vm302, %v312, 0.0
  %v314 = vrot.slane %v313, 4
  %v315 = vadd.f32 %v313, %v314
  %v316 = vrot.slane %v315, 2
  %v317 = vadd.f32 %v315, %v316
  %v318 = vrot.slane %v317, 1
  %v319 = vadd.f32 %v317, %v318
  %v320 = vrcp.pop %v319
  %v321 = vmul.f32 %v319, %v320
  %v322 = vsub.f32 1.0, %v321
  %v323 = vmul.f32 %v320, %v322
  %v324 = vadd.f32 %v320, %v323
  %vm325 = vweird.f32 %v319
  %vm326 = vweird.f32 %v320
  %vm327 = vmor %vm325, %vm326
  %v328 = vsel %vm327, %v320, %v324
  %v329 = vand.u32 2147483647, %v319
  %vm330 = vcmp.eq.f32.partialorder %v329, 8.507059e+37
  %v331 = vand.u32 %v319, 2147483648
  %v332 = vor.u32 1.1754944e-38, %v331
  %v333 = vsel %vm330, %v332, %v328
  %v334 = vmul.f32 %v312, %v333
  %335 = vst.msk [vmem:[%s7] sm:$0xff] %vm302, %v334
  %v336 = vsel %vm302, %v294, -inf
  %v337 = vrot.slane %v336, 4
  %v338 = vmax.f32 %v336, %v337
  %v339 = vrot.slane %v338, 2
  %v340 = vmax.f32 %v338, %v339
  %v341 = vrot.slane %v340, 1
  %v342 = vmax.f32 %v340, %v341
  %v343 = vsub.f32 %v294, %v342
  %v344 = vmul.f32 %v343, 1.442695
  %v345 = vpow.pop %v344
  %v346 = vsel %vm302, %v345, 0.0
  %v347 = vrot.slane %v346, 4
  %v348 = vadd.f32 %v346, %v347
  %v349 = vrot.slane %v348, 2
  %v350 = vadd.f32 %v348, %v349
  %v351 = vrot.slane %v350, 1
  %v352 = vadd.f32 %v350, %v351
  %v353 = vrcp.pop %v352
  %v354 = vmul.f32 %v352, %v353
  %v355 = vsub.f32 1.0, %v354
  %v356 = vmul.f32 %v353, %v355
  %v357 = vadd.f32 %v353, %v356
  %vm358 = vweird.f32 %v352
  %vm359 = vweird.f32 %v353
  %vm360 = vmor %vm358, %vm359
  %v361 = vsel %vm360, %v353, %v357
  %v362 = vand.u32 2147483647, %v352
  %vm363 = vcmp.eq.f32.partialorder %v362, 8.507059e+37
  %v364 = vand.u32 %v352, 2147483648
  %v365 = vor.u32 1.1754944e-38, %v364
  %v366 = vsel %vm363, %v365, %v361
  %v367 = vmul.f32 %v345, %v366
  %368 = vst.msk [vmem:[%s7 + $0x8] sm:$0xff] %vm302, %v367
  %v369 = vsel %vm302, %v297, -inf
  %v370 = vrot.slane %v369, 4
  %v371 = vmax.f32 %v369, %v370
  %v372 = vrot.slane %v371, 2
  %v373 = vmax.f32 %v371, %v372
  %v374 = vrot.slane %v373, 1
  %v375 = vmax.f32 %v373, %v374
  %v376 = vsub.f32 %v297, %v375
  %v377 = vmul.f32 %v376, 1.442695
  %v378 = vpow.pop %v377
  %v379 = vsel %vm302, %v378, 0.0
  %v380 = vrot.slane %v379, 4
  %v381 = vadd.f32 %v379, %v380
  %v382 = vrot.slane %v381, 2
  %v383 = vadd.f32 %v381, %v382
  %v384 = vrot.slane %v383, 1
  %v385 = vadd.f32 %v383, %v384
  %v386 = vrcp.pop %v385
  %v387 = vmul.f32 %v385, %v386
  %v388 = vsub.f32 1.0, %v387
  %v389 = vmul.f32 %v386, %v388
  %v390 = vadd.f32 %v386, %v389
  %vm391 = vweird.f32 %v385
  %vm392 = vweird.f32 %v386
  %vm393 = vmor %vm391, %vm392
  %v394 = vsel %vm393, %v386, %v390
  %v395 = vand.u32 2147483647, %v385
  %vm396 = vcmp.eq.f32.partialorder %v395, 8.507059e+37
  %v397 = vand.u32 %v385, 2147483648
  %v398 = vor.u32 1.1754944e-38, %v397
  %v399 = vsel %vm396, %v398, %v394
  %v400 = vmul.f32 %v378, %v399
  %401 = vst.msk [vmem:[%s7 + $0x10] sm:$0xff] %vm302, %v400
  %v402 = vsel %vm302, %v300, -inf
  %v403 = vrot.slane %v402, 4
  %v404 = vmax.f32 %v402, %v403
  %v405 = vrot.slane %v404, 2
  %v406 = vmax.f32 %v404, %v405
  %v407 = vrot.slane %v406, 1
  %v408 = vmax.f32 %v406, %v407
  %v409 = vsub.f32 %v300, %v408
  %v410 = vmul.f32 %v409, 1.442695
  %v411 = vpow.pop %v410
  %v412 = vsel %vm302, %v411, 0.0
  %v413 = vrot.slane %v412, 4
  %v414 = vadd.f32 %v412, %v413
  %v415 = vrot.slane %v414, 2
  %v416 = vadd.f32 %v414, %v415
  %v417 = vrot.slane %v416, 1
  %v418 = vadd.f32 %v416, %v417
  %v419 = vrcp.pop %v418
  %v420 = vmul.f32 %v418, %v419
  %v421 = vsub.f32 1.0, %v420
  %v422 = vmul.f32 %v419, %v421
  %v423 = vadd.f32 %v419, %v422
  %vm424 = vweird.f32 %v418
  %vm425 = vweird.f32 %v419
  %vm426 = vmor %vm424, %vm425
  %v427 = vsel %vm426, %v419, %v423
  %v428 = vand.u32 2147483647, %v418
  %vm429 = vcmp.eq.f32.partialorder %v428, 8.507059e+37
  %v430 = vand.u32 %v418, 2147483648
  %v431 = vor.u32 1.1754944e-38, %v430
  %v432 = vsel %vm429, %v431, %v427
  %v433 = vmul.f32 %v411, %v432
  %434 = vst.msk [vmem:[%s7 + $0x18] sm:$0xff] %vm302, %v433
  // Predicated region
  $region30: #{tpu_custom_call.1} parent=0 // pred_check
    _
  $region31: #{tpu_custom_call.1} parent=0 // pred_check_branch
    %436 = sbr.rel (0) target = $region33
  $region32: #{tpu_custom_call.1} parent=0 // pred_region
    _
  $region33: #{tpu_custom_call.1} parent=0 // pred_fallthru
    _
  // Predicated region
  $region34: #{tpu_custom_call.1} parent=0 // pred_check
    _
  $region35: #{tpu_custom_call.1} parent=0 // pred_check_branch
    %438 = sbr.rel (0) target = $region37
  $region36: #{tpu_custom_call.1} parent=0 // pred_region
    _
  $region37: #{tpu_custom_call.1} parent=0 // pred_fallthru
    _

</llo_original>
